<compile_context>
chip_gen: v7x
topology: tpu7x:2x2x1
jax: 0.10.0
libtpu: 0.0.40
codegen_flags: <defaults>
</compile_context>

<pallas_src>
import functools
import math

import jax
import jax.numpy as jnp
from jax.experimental import pallas as pl
from jax.experimental.pallas import tpu as pltpu

_LANE = 128
_SUBLANE = 8
_NEG_BIG = -1e30      # bias for padded vocab columns: exp() underflows to exactly 0
_MIN_FULL_TM = 32     # smallest row tile for which the resident-W path is still worth it


def _round_up(x, m):
    return (x + m - 1) // m * m


def _cdiv(a, b):
    return (a + b - 1) // b


def _vmem_capacity_bytes():
    """Physical per-core VMEM; falls back to the smallest current generation (v7x, 64 MiB)."""
    try:
        info = pltpu.get_tpu_info()
        cap = int(getattr(info, "vmem_capacity_bytes", 0) or 0)
        if cap > 0:
            return cap
    except Exception:
        pass
    return 64 << 20


def _block_spec(shape, index_map, *, single_buffered=False):
    """BlockSpec; grid-invariant operands get a single VMEM buffer instead of two."""
    if single_buffered and hasattr(pl, "Buffered"):
        try:
            return pl.BlockSpec(shape, index_map, pipeline_mode=pl.Buffered(1))
        except TypeError:  # older jax without pipeline_mode -> plain (double-buffered) spec
            pass
    return pl.BlockSpec(shape, index_map)


def _layer_norm_f32(x, gamma, beta, eps, d_model):
    # annotated-transformer LayerNorm: a_2*(x-mean)/(std+eps)+b_2, unbiased std (torch.std).
    mean = jnp.mean(x, axis=-1, keepdims=True)
    diff = x - mean
    var = jnp.sum(diff * diff, axis=-1, keepdims=True) / (d_model - 1)
    inv = pl.reciprocal(jnp.sqrt(var) + eps, approx=False)   # EUP slot, not a VPU divide
    return gamma * diff * inv + beta


# ----------------------------------------------------------------------------
# Kernel 1: full vocab axis resident in VMEM (single matmul, single pass).
# ----------------------------------------------------------------------------
def _kernel_full(x_ref, w_ref, b_ref, g_ref, be_ref, o_ref, *,
                 add_norm, eps, d_model, compute_dtype):
    x = x_ref[...].astype(jnp.float32)                        # (TM, d_model)
    if add_norm:
        x = _layer_norm_f32(x, g_ref[...], be_ref[...], eps, d_model)
    xn = x.astype(compute_dtype)                              # bf16 into the MXU
    # 1/T and vocab padding are already folded into w_ref / b_ref on the host.
    logits = jnp.dot(xn, w_ref[...], preferred_element_type=jnp.float32) + b_ref[...]
    m = jnp.max(logits, axis=-1, keepdims=True)
    shifted = logits - m
    lse = jnp.log(jnp.sum(jnp.exp(shifted), axis=-1, keepdims=True))
    o_ref[...] = (shifted - lse).astype(o_ref.dtype)


# ----------------------------------------------------------------------------
# Kernel 2a: vocab-tiled projection + online lse stats (W streamed exactly once
# per row tile; no second matmul pass).
# grid = (row_tiles, vocab_tiles); vocab axis is the inner "arbitrary" axis.
# ----------------------------------------------------------------------------
def _kernel_proj_stats(x_ref, w_ref, b_ref, g_ref, be_ref,
                       logits_ref, lse_ref, xn_ref, m_ref, l_ref, *,
                       add_norm, eps, d_model):
    j = pl.program_id(1)

    @pl.when(j == 0)
    def _init():
        x = x_ref[...].astype(jnp.float32)
        if add_norm:
            x = _layer_norm_f32(x, g_ref[...], be_ref[...], eps, d_model)
        xn_ref[...] = x.astype(xn_ref.dtype)                  # LN computed once per row tile
        m_ref[...] = jnp.full(m_ref.shape, -jnp.inf, m_ref.dtype)
        l_ref[...] = jnp.zeros(l_ref.shape, l_ref.dtype)

    logits = jnp.dot(xn_ref[...], w_ref[...], preferred_element_type=jnp.float32)
    logits = logits + b_ref[...]                              # (TM, TV) f32
    logits_ref[...] = logits.astype(logits_ref.dtype)         # raw logits written once

    m_prev = m_ref[...]
    m_new = jnp.maximum(m_prev, jnp.max(logits, axis=-1, keepdims=True))
    l_ref[...] = (l_ref[...] * jnp.exp(m_prev - m_new)
                  + jnp.sum(jnp.exp(logits - m_new), axis=-1, keepdims=True))
    m_ref[...] = m_new

    @pl.when(j == pl.num_programs(1) - 1)
    def _finalize():
        lse_ref[...] = m_ref[...] + jnp.log(l_ref[...])


# ----------------------------------------------------------------------------
# Kernel 2b: elementwise fix-up  out = logits - lse  (no matmul, lane-dense stores).
# ----------------------------------------------------------------------------
def _kernel_fixup(logits_ref, lse_ref, o_ref):
    o_ref[...] = (logits_ref[...].astype(jnp.float32) - lse_ref[...]).astype(o_ref.dtype)


# ----------------------------------------------------------------------------
# Builder: packs weights ONCE and returns a reusable forward(x) closure.
# ----------------------------------------------------------------------------
def make_generator(w, b, gamma=None, beta=None, *, add_norm=False, T=1.0, eps=1e-6,
                   compute_dtype=jnp.bfloat16, out_dtype=jnp.bfloat16,
                   intermediate_dtype=jnp.float32,
                   tile_rows=None, vocab_tile=None, force_vocab_tiling=False):
    """w: (d_model, vocab) == torch proj.weight.T; b: (vocab,);
    gamma/beta: (d_model,) LayerNorm a_2/b_2 (required when add_norm=True).

    Weight packing (fold 1/T, cast to the MXU dtype, pad the vocab axis) and the
    full-vs-tiled path decision happen once here, not per call.
    Notes: on v5e pass tile_rows=256 (its HBM:MXU ratio makes 256 already MXU-bound);
    intermediate_dtype=bfloat16 halves the tiled fix-up traffic at a small precision cost
    and enables in-place aliasing when it matches out_dtype.
    """
    d_model, vocab = w.shape
    out_dtype = jnp.dtype(out_dtype)
    compute_dtype = jnp.dtype(compute_dtype)
    intermediate_dtype = jnp.dtype(intermediate_dtype)
    cb, ob, ib = compute_dtype.itemsize, out_dtype.itemsize, intermediate_dtype.itemsize

    cap = _vmem_capacity_bytes()
    budget = int(cap * 0.70)          # what the pipeline may occupy (path / tile selection)
    hard_cap = int(cap * 0.90)        # never request more than the chip physically has

    # ---------- full (vocab-resident) path sizing ----------------------------
    vocab_pf = _round_up(vocab, _LANE)
    # W single-buffered (1x) + bias + LN params ; per-row: x (2x, f32) + in-kernel x/xn
    # temporaries + out (2x) + ~3 f32 (TM, vocab) logits temporaries.
    fixed_f = d_model * vocab_pf * cb + vocab_pf * 4 + 2 * d_model * 4
    per_row_f = 16 * d_model + vocab_pf * (2 * ob + 12)
    tm_full_budget = 0
    if budget > fixed_f:
        tm_full_budget = int((budget - fixed_f) // per_row_f) // _SUBLANE * _SUBLANE
    use_tiled = force_vocab_tiling or tm_full_budget < _MIN_FULL_TM
    tm_cap = _round_up(int(tile_rows), _SUBLANE) if tile_rows else 512
    tm_full = max(_SUBLANE, min(tm_full_budget, tm_cap))

    # ---------- vocab-tiled path sizing ---------------------------------------
    tm_target = _round_up(int(tile_rows), _SUBLANE) if tile_rows else 512
    if vocab_tile:
        tv_candidates = [max(_LANE, _round_up(int(vocab_tile), _LANE))]
    else:
        tv_candidates = [2048, 1024, 512, 256, 128]

    def _fixed_t(tv_):
        return 2 * d_model * tv_ * cb + 8 * tv_ + 8 * d_model          # W/bias (2x) + LN params

    def _per_row_t(tv_):
        # x (2x, f32) + xn scratch + in-kernel x temp + m/l/lse + interm out (2x) + f32 temps
        return 12 * d_model + d_model * cb + 24 + tv_ * (2 * ib + 12)

    def _rows_fit(tv_):
        rem = budget - _fixed_t(tv_)
        if rem <= 0:
            return 0
        return int(rem // _per_row_t(tv_)) // _SUBLANE * _SUBLANE

    tm_tiled, tv = None, None
    for cand in tv_candidates:                       # biggest (lane-dense) vocab tile first
        if _rows_fit(cand) >= tm_target:
            tm_tiled, tv = tm_target, cand
            break
    if tm_tiled is None:                             # shrink tv before tm (keeps W reuse high)
        tv = tv_candidates[-1]
        tm_tiled = max(_SUBLANE, min(tm_target, _rows_fit(tv)))
    vocab_pt = _round_up(vocab, tv)

    vocab_p = vocab_pt if use_tiled else vocab_pf

    # ---------- host-side packing (done once, reused across calls) ------------
    inv_t = 1.0 / float(T)
    w_p = (w.astype(jnp.float32) * inv_t).astype(compute_dtype)
    b_p = b.astype(jnp.float32) * inv_t
    if vocab_p != vocab:
        w_p = jnp.pad(w_p, ((0, 0), (0, vocab_p - vocab)))
        b_p = jnp.pad(b_p, (0, vocab_p - vocab), constant_values=_NEG_BIG)
    b_p = b_p.reshape(1, vocab_p)

    if add_norm:
        if gamma is None or beta is None:
            raise ValueError("add_norm=True requires gamma/beta")
        g2d = gamma.reshape(1, d_model).astype(jnp.float32)
        be2d = beta.reshape(1, d_model).astype(jnp.float32)
    else:
        g2d = jnp.ones((1, d_model), jnp.float32)
        be2d = jnp.zeros((1, d_model), jnp.float32)

    # ---------- the per-call forward ------------------------------------------
    def forward(x):
        if x.shape[-1] != d_model:
            raise ValueError(f"expected last dim {d_model}, got {x.shape}")
        lead = x.shape[:-1]
        n_rows = int(math.prod(lead)) if lead else 1
        x2d = x.reshape(n_rows, d_model)

        tm = tm_tiled if use_tiled else tm_full
        tm = max(_SUBLANE, min(tm, _round_up(n_rows, _SUBLANE)))
        if n_rows >= 64:        # >=2 row tiles so v7x's two TensorCores both get work
            tm = min(tm, _round_up(_cdiv(n_rows, 2), _SUBLANE))
        rows_p = _round_up(n_rows, tm)
        if rows_p != n_rows:
            x2d = jnp.pad(x2d, ((0, rows_p - n_rows), (0, 0)))

        if not use_tiled:
            est = fixed_f + per_row_f * tm
            vmem_limit = int(min(hard_cap, max(32 << 20, est + est // 3 + (2 << 20))))
            kernel = functools.partial(_kernel_full, add_norm=add_norm, eps=float(eps),
                                       d_model=d_model, compute_dtype=compute_dtype)
            out = pl.pallas_call(
                kernel,
                out_shape=jax.ShapeDtypeStruct((rows_p, vocab_p), out_dtype),
                grid_spec=pltpu.PrefetchScalarGridSpec(
                    num_scalar_prefetch=0,
                    grid=(rows_p // tm,),
                    in_specs=[
                        pl.BlockSpec((tm, d_model), lambda i: (i, 0)),               # x rows
                        _block_spec((d_model, vocab_p), lambda i: (0, 0),
                                    single_buffered=True),                           # W (resident, 1 copy)
                        _block_spec((1, vocab_p), lambda i: (0, 0), single_buffered=True),
                        _block_spec((1, d_model), lambda i: (0, 0), single_buffered=True),
                        _block_spec((1, d_model), lambda i: (0, 0), single_buffered=True),
                    ],
                    out_specs=pl.BlockSpec((tm, vocab_p), lambda i: (i, 0)),
                ),
                compiler_params=pltpu.CompilerParams(
                    dimension_semantics=("parallel",),
                    vmem_limit_bytes=vmem_limit),
            )(x2d, w_p, b_p, g2d, be2d)
        else:
            est = _fixed_t(tv) + _per_row_t(tv) * tm
            vmem_limit = int(min(hard_cap, max(32 << 20, est + est // 3 + (2 << 20))))
            kernel = functools.partial(_kernel_proj_stats, add_norm=add_norm,
                                       eps=float(eps), d_model=d_model)
            logits_i, lse = pl.pallas_call(
                kernel,
                out_shape=(jax.ShapeDtypeStruct((rows_p, vocab_p), intermediate_dtype),
                           jax.ShapeDtypeStruct((rows_p, 1), jnp.float32)),
                grid_spec=pltpu.PrefetchScalarGridSpec(
                    num_scalar_prefetch=0,
                    grid=(rows_p // tm, vocab_p // tv),
                    in_specs=[
                        pl.BlockSpec((tm, d_model), lambda i, j: (i, 0)),  # x rows (constant over j)
                        pl.BlockSpec((d_model, tv), lambda i, j: (0, j)),  # W tile (streamed once)
                        pl.BlockSpec((1, tv),       lambda i, j: (0, j)),  # bias tile
                        _block_spec((1, d_model),   lambda i, j: (0, 0), single_buffered=True),
                        _block_spec((1, d_model),   lambda i, j: (0, 0), single_buffered=True),
                    ],
                    out_specs=(pl.BlockSpec((tm, tv), lambda i, j: (i, j)),   # raw logits
                               pl.BlockSpec((tm, 1),  lambda i, j: (i, 0))),  # per-row lse
                    scratch_shapes=[
                        pltpu.VMEM((tm, d_model), compute_dtype),  # normalized rows (bf16)
                        pltpu.VMEM((tm, 1), jnp.float32),          # running max
                        pltpu.VMEM((tm, 1), jnp.float32),          # running sum(exp)
                    ],
                ),
                compiler_params=pltpu.CompilerParams(
                    dimension_semantics=("parallel", "arbitrary"),
                    vmem_limit_bytes=vmem_limit),
            )(x2d, w_p, b_p, g2d, be2d)

            # Elementwise fix-up: out = logits - lse.  No second matmul / W pass.
            # In-place (buffer-aliased) when intermediate and output dtypes match;
            # under jit with donation this avoids an extra (rows, vocab) HBM buffer.
            alias = {0: 0} if intermediate_dtype == out_dtype else {}
            fix_est = tm * tv * (2 * ib + 2 * ob + 8) + 16 * tm
            fix_limit = int(min(hard_cap, max(32 << 20, 2 * fix_est)))
            out = pl.pallas_call(
                _kernel_fixup,
                out_shape=jax.ShapeDtypeStruct((rows_p, vocab_p), out_dtype),
                grid_spec=pltpu.PrefetchScalarGridSpec(
                    num_scalar_prefetch=0,
                    grid=(rows_p // tm, vocab_p // tv),
                    in_specs=[
                        pl.BlockSpec((tm, tv), lambda i, j: (i, j)),
                        pl.BlockSpec((tm, 1),  lambda i, j: (i, 0)),
                    ],
                    out_specs=pl.BlockSpec((tm, tv), lambda i, j: (i, j)),
                ),
                compiler_params=pltpu.CompilerParams(
                    dimension_semantics=("parallel", "parallel"),
                    vmem_limit_bytes=fix_limit),
                input_output_aliases=alias,
            )(logits_i, lse)

        return out[:n_rows, :vocab].reshape(lead + (vocab,))

    return forward


def generator_forward(x, w, b, gamma=None, beta=None, **kwargs):
    """One-shot convenience wrapper.  For repeated calls with the same weights use
    make_generator(...) once and reuse the closure (weight packing is hoisted)."""
    return make_generator(w, b, gamma, beta, **kwargs)(x)


# ----------------------------------------------------------------------------
# Reference (mirrors the kernel's bf16 weight/activation quantization + 1/T fold
# so the comparison isolates kernel plumbing, not bf16 rounding).
# ----------------------------------------------------------------------------
def _reference(x, w, b, gamma, beta, add_norm, T, eps=1e-6, compute_dtype=jnp.bfloat16):
    xf = x.astype(jnp.float32)
    d_model = x.shape[-1]
    if add_norm:
        mean = jnp.mean(xf, axis=-1, keepdims=True)
        diff = xf - mean
        var = jnp.sum(diff * diff, axis=-1, keepdims=True) / (d_model - 1)
        xf = gamma * diff / (jnp.sqrt(var) + eps) + beta
    inv_t = 1.0 / float(T)
    wq = (w.astype(jnp.float32) * inv_t).astype(compute_dtype).astype(jnp.float32)
    xq = xf.astype(compute_dtype).astype(jnp.float32)
    logits = xq @ wq + b.astype(jnp.float32) * inv_t
    return jax.nn.log_softmax(logits, axis=-1)


if __name__ == "__main__":
    key = jax.random.PRNGKey(0)
    batch, seq, d_model, vocab = 2, 8, 32, 250   # vocab=250 exercises vocab padding too

    k_x, k_w, k_b = jax.random.split(key, 3)
    x = jax.random.normal(k_x, (batch, seq, d_model), dtype=jnp.float32)
    # nn.Linear(d_model, vocab): weight (vocab, d_model); store transposed for the kernel.
    bound = 1.0 / (d_model ** 0.5)
    w_t = jax.random.uniform(k_w, (d_model, vocab), minval=-bound, maxval=bound,
                             dtype=jnp.float32)
    b = jax.random.uniform(k_b, (vocab,), minval=-bound, maxval=bound, dtype=jnp.float32)
    gamma = jnp.ones((d_model,), dtype=jnp.float32)   # LayerNorm a_2 init
    beta = jnp.zeros((d_model,), dtype=jnp.float32)   # LayerNorm b_2 init

    # 1) resident-W (full-vocab) path, add_norm=True; weights packed once via make_generator.
    gen = make_generator(w_t, b, gamma, beta, add_norm=True, T=1.0, out_dtype=jnp.float32)
    out_full = jax.block_until_ready(gen(x))
    ref_full = _reference(x, w_t, b, gamma, beta, True, 1.0)
    assert out_full.shape == (batch, seq, vocab)
    assert jnp.allclose(out_full, ref_full, atol=2e-3, rtol=2e-3), "full-path mismatch"

    # 2) forced vocab-tiled path (single matmul pass + elementwise lse fix-up, aliased), T != 1.
    out_tiled = generator_forward(x, w_t, b, gamma, beta, add_norm=True, T=1.3,
                                  force_vocab_tiling=True, vocab_tile=128, tile_rows=8,
                                  out_dtype=jnp.float32, intermediate_dtype=jnp.float32)
    out_tiled = jax.block_until_ready(out_tiled)
    ref_tiled = _reference(x, w_t, b, gamma, beta, True, 1.3)
    assert jnp.allclose(out_tiled, ref_tiled, atol=2e-3, rtol=2e-3), "tiled-path mismatch"

    # 3) add_norm=False (the torch module default).
    out_nonorm = generator_forward(x, w_t, b, add_norm=False, T=1.0, out_dtype=jnp.float32)
    out_nonorm = jax.block_until_ready(out_nonorm)
    ref_nonorm = _reference(x, w_t, b, gamma, beta, False, 1.0)
    assert jnp.allclose(out_nonorm, ref_nonorm, atol=2e-3, rtol=2e-3), "no-norm mismatch"

    # 4) production default: bf16 writeback — loose check against the f32 reference.
    out_bf16 = generator_forward(x, w_t, b, gamma, beta, add_norm=True, T=1.0)
    out_bf16 = jax.block_until_ready(out_bf16)
    assert out_bf16.dtype == jnp.bfloat16
    assert jnp.allclose(out_bf16.astype(jnp.float32), ref_full, atol=5e-2, rtol=2e-2), \
        "bf16 writeback mismatch"

    print("KERNEL_OK")
</pallas_src>

<mosaic_0001>
module attributes {stable_mosaic.version = 11 : i64} {
  func.func @_kernel_full(%arg0: i32, %arg1: memref<16x32xf32, #tpu.memory_space<vmem>>, %arg2: memref<32x256xbf16, #tpu.memory_space<vmem>>, %arg3: memref<1x256xf32, #tpu.memory_space<vmem>>, %arg4: memref<1x32xf32, #tpu.memory_space<vmem>>, %arg5: memref<1x32xf32, #tpu.memory_space<vmem>>, %arg6: memref<16x256xf32, #tpu.memory_space<vmem>>) attributes {dimension_semantics = [#tpu.dimension_semantics<parallel>], iteration_bounds = array<i64: 1>, scalar_prefetch = 0 : i64, scratch_operands = 0 : i64, tpu.core_type = #tpu.core_type<tc>, window_params = [{transform_indices = @transform_0, window_bounds = array<i64: 16, 32>}, {pipeline_mode = #tpu.pipeline_mode<synchronous>, transform_indices = @transform_1, window_bounds = array<i64: 32, 256>}, {pipeline_mode = #tpu.pipeline_mode<synchronous>, transform_indices = @transform_2, window_bounds = array<i64: 1, 256>}, {pipeline_mode = #tpu.pipeline_mode<synchronous>, transform_indices = @transform_3, window_bounds = array<i64: 1, 32>}, {pipeline_mode = #tpu.pipeline_mode<synchronous>, transform_indices = @transform_4, window_bounds = array<i64: 1, 32>}, {transform_indices = @transform_5, window_bounds = array<i64: 16, 256>}]} {
    %c0 = arith.constant 0 : index
    %c0_0 = arith.constant 0 : index
    %0 = vector.load %arg1[%c0, %c0_0] : memref<16x32xf32, #tpu.memory_space<vmem>>, vector<16x32xf32>
    %c0_1 = arith.constant 0 : index
    %c0_2 = arith.constant 0 : index
    %1 = vector.load %arg4[%c0_1, %c0_2] : memref<1x32xf32, #tpu.memory_space<vmem>>, vector<1x32xf32>
    %c0_3 = arith.constant 0 : index
    %c0_4 = arith.constant 0 : index
    %2 = vector.load %arg5[%c0_3, %c0_4] : memref<1x32xf32, #tpu.memory_space<vmem>>, vector<1x32xf32>
    %cst = arith.constant dense<0.000000e+00> : vector<16xf32>
    %3 = vector.multi_reduction <add>, %0, %cst [1] : vector<16x32xf32> to vector<16xf32>
    %4 = vector.shape_cast %3 : vector<16xf32> to vector<16x1xf32>
    %cst_5 = arith.constant 3.200000e+01 : f32
    %5 = vector.broadcast %cst_5 : f32 to vector<16x1xf32>
    %6 = arith.divf %4, %5 : vector<16x1xf32>
    %7 = vector.broadcast %6 : vector<16x1xf32> to vector<16x32xf32>
    %8 = arith.subf %0, %7 : vector<16x32xf32>
    %9 = arith.mulf %8, %8 : vector<16x32xf32>
    %cst_6 = arith.constant dense<0.000000e+00> : vector<16xf32>
    %10 = vector.multi_reduction <add>, %9, %cst_6 [1] : vector<16x32xf32> to vector<16xf32>
    %11 = vector.shape_cast %10 : vector<16xf32> to vector<16x1xf32>
    %cst_7 = arith.constant 3.100000e+01 : f32
    %12 = vector.broadcast %cst_7 : f32 to vector<16x1xf32>
    %13 = arith.divf %11, %12 : vector<16x1xf32>
    %14 = math.sqrt %13 : vector<16x1xf32>
    %cst_8 = arith.constant 9.99999997E-7 : f32
    %15 = vector.broadcast %cst_8 : f32 to vector<16x1xf32>
    %16 = arith.addf %14, %15 : vector<16x1xf32>
    %17 = tpu.reciprocal %16 : vector<16x1xf32> -> vector<16x1xf32>
    %18 = vector.broadcast %1 : vector<1x32xf32> to vector<16x32xf32>
    %19 = arith.mulf %18, %8 : vector<16x32xf32>
    %20 = vector.broadcast %17 : vector<16x1xf32> to vector<16x32xf32>
    %21 = arith.mulf %19, %20 : vector<16x32xf32>
    %22 = vector.broadcast %2 : vector<1x32xf32> to vector<16x32xf32>
    %23 = arith.addf %21, %22 : vector<16x32xf32>
    %24 = arith.truncf %23 : vector<16x32xf32> to vector<16x32xbf16>
    %c0_9 = arith.constant 0 : index
    %c0_10 = arith.constant 0 : index
    %25 = vector.load %arg2[%c0_9, %c0_10] : memref<32x256xbf16, #tpu.memory_space<vmem>>, vector<32x256xbf16>
    %cst_11 = arith.constant dense<0.000000e+00> : vector<16x256xf32>
    %26 = tpu.matmul %24, %25, %cst_11 {dimension_numbers = #tpu.dot_dimension_numbers<[1], [0], [0], [1], [0, 0, 1, 1], [], []>} : vector<16x32xbf16>, vector<32x256xbf16>, vector<16x256xf32> -> vector<16x256xf32>
    %c0_12 = arith.constant 0 : index
    %c0_13 = arith.constant 0 : index
    %27 = vector.load %arg3[%c0_12, %c0_13] : memref<1x256xf32, #tpu.memory_space<vmem>>, vector<1x256xf32>
    %28 = vector.broadcast %27 : vector<1x256xf32> to vector<16x256xf32>
    %29 = arith.addf %26, %28 : vector<16x256xf32>
    %cst_14 = arith.constant dense<0xFF800000> : vector<16xf32>
    %30 = vector.multi_reduction <maximumf>, %29, %cst_14 [1] : vector<16x256xf32> to vector<16xf32>
    %31 = vector.shape_cast %30 : vector<16xf32> to vector<16x1xf32>
    %32 = vector.broadcast %31 : vector<16x1xf32> to vector<16x256xf32>
    %33 = arith.subf %29, %32 : vector<16x256xf32>
    %34 = math.exp %33 : vector<16x256xf32>
    %cst_15 = arith.constant dense<0.000000e+00> : vector<16xf32>
    %35 = vector.multi_reduction <add>, %34, %cst_15 [1] : vector<16x256xf32> to vector<16xf32>
    %36 = vector.shape_cast %35 : vector<16xf32> to vector<16x1xf32>
    %37 = math.log %36 : vector<16x1xf32>
    %38 = vector.broadcast %37 : vector<16x1xf32> to vector<16x256xf32>
    %39 = arith.subf %33, %38 : vector<16x256xf32>
    %c0_16 = arith.constant 0 : index
    %c0_17 = arith.constant 0 : index
    %40 = vector.load %arg6[%c0_16, %c0_17] : memref<16x256xf32, #tpu.memory_space<vmem>>, vector<16x256xf32>
    tpu.vector_store %arg6[%c0_16, %c0_17], %39 {strides = array<i32>} : memref<16x256xf32, #tpu.memory_space<vmem>>, vector<16x256xf32>,
    return
  }
  func.func @transform_0(%arg0: i32) -> (i32, i32) {
    %c0_i32 = arith.constant 0 : i32
    %c0_i32_0 = arith.constant 0 : i32
    return %arg0, %c0_i32 : i32, i32
  }
  func.func @transform_1(%arg0: i32) -> (i32, i32) {
    %c0_i32 = arith.constant 0 : i32
    %c0_i32_0 = arith.constant 0 : i32
    %c0_i32_1 = arith.constant 0 : i32
    return %c0_i32, %c0_i32_0 : i32, i32
  }
  func.func @transform_2(%arg0: i32) -> (i32, i32) {
    %c0_i32 = arith.constant 0 : i32
    %c0_i32_0 = arith.constant 0 : i32
    %c0_i32_1 = arith.constant 0 : i32
    return %c0_i32, %c0_i32_0 : i32, i32
  }
  func.func @transform_3(%arg0: i32) -> (i32, i32) {
    %c0_i32 = arith.constant 0 : i32
    %c0_i32_0 = arith.constant 0 : i32
    %c0_i32_1 = arith.constant 0 : i32
    return %c0_i32, %c0_i32_0 : i32, i32
  }
  func.func @transform_4(%arg0: i32) -> (i32, i32) {
    %c0_i32 = arith.constant 0 : i32
    %c0_i32_0 = arith.constant 0 : i32
    %c0_i32_1 = arith.constant 0 : i32
    return %c0_i32, %c0_i32_0 : i32, i32
  }
  func.func @transform_5(%arg0: i32) -> (i32, i32) {
    %c0_i32 = arith.constant 0 : i32
    %c0_i32_0 = arith.constant 0 : i32
    return %arg0, %c0_i32 : i32, i32
  }
}

</mosaic_0001>

<llo_original>
// kernel: tpu_custom_call.1
$region0: #{tpu_custom_call.1}
  #allocation0 [shape = 'u32[]', space=smem, size = 0x4, offset = 0x4, fixed_abs, tag = 'smem constant byte address 0x4 - core index']
  #allocation1 [shape = 'u32[144,128]{1,0:T(1,128)}', space=vmem, size = 0x12000, scoped, tag = 'internal scratch']
  %s0 = inlined_call_operand.hbm [shape: f32[16,32], index: 0, kind: input, shape index: {}]
  %s1 = inlined_call_operand.hbm [shape: bf16[32,256], index: 1, kind: input, shape index: {}]
  %s2 = inlined_call_operand.vmem [shape: f32[1,256], index: 2, kind: input, shape index: {}]
  %s3 = inlined_call_operand.vmem [shape: f32[1,32], index: 3, kind: input, shape index: {}]
  %s4 = inlined_call_operand.vmem [shape: f32[1,32], index: 4, kind: input, shape index: {}]
  %s5 = inlined_call_operand.hbm [shape: f32[16,256], index: 5, kind: output, shape index: {}]
  %s6 = sld [smem:[#allocation0]]
  $region38: #{tpu_custom_call.1} parent=0
    _
  %s8 = ssub.s32 1, %s6
  %s9 = scalar_select 0, %s8, %s6
  $region1: #{tpu_custom_call.1} parent=0
    #allocation2 [shape = 'u8[8192]{0}', space=vmem, size = 0x2000, scoped, tag = 'input window, operand 0, single buffered']
    #allocation3 [shape = 's32[1]{0}', space=sflag, size = 0x4, scoped, tag = 'scoped memory for tpu_custom_call.1']
    #allocation4 [shape = 's32[1]{0}', space=sflag, size = 0x4, scoped, tag = 'scoped memory for tpu_custom_call.1']
    #allocation5 [shape = 'u8[16384]{0}', space=vmem, size = 0x4000, scoped, tag = 'input window, operand 1, single buffered']
    #allocation6 [shape = 's32[1]{0}', space=sflag, size = 0x4, scoped, tag = 'scoped memory for tpu_custom_call.1']
    #allocation7 [shape = 'u8[16384]{0}', space=vmem, size = 0x4000, scoped, tag = 'output window, operand 0, single buffered']
    %10 = vsyncpa [#allocation3], 0
    %11 = vsyncpa [#allocation6], 0
    %12 = vsyncpa [#allocation4], 0
    // Predicated region
    $region2: #{tpu_custom_call.1} parent=1 // pred_check
      _
    $region3: #{tpu_custom_call.1} parent=1 // pred_check_branch
      %14 = sbr.rel (0) target = $region5
    $region4: #{tpu_custom_call.1} parent=1 // pred_region
      %s16 = ssub.s32 256, 256
      %17 = vsyncadd [#allocation3], %s16
      %s18 = sshll.u32 [#allocation2], 4
      %s19 = int_to_ptr.vmem [resolvable:$true] %s18
      %24 = dma.hbm_to_vmem [thread:$0]  %s0, 256, %s19, [#allocation3], 128, 128, 8
    $region5: #{tpu_custom_call.1} parent=1 // pred_fallthru
      _
    // Predicated region
    $region6: #{tpu_custom_call.1} parent=1 // pred_check
      _
    $region7: #{tpu_custom_call.1} parent=1 // pred_check_branch
      %26 = sbr.rel (0) target = $region9
    $region8: #{tpu_custom_call.1} parent=1 // pred_region
      %s28 = ssub.s32 512, 512
      %29 = vsyncadd [#allocation6], %s28
      %s30 = sshll.u32 [#allocation5], 4
      %s31 = int_to_ptr.vmem [resolvable:$true] %s30
      %36 = dma.hbm_to_vmem [thread:$0]  %s1, 512, %s31, [#allocation6], 128, 128, 8
    $region9: #{tpu_custom_call.1} parent=1 // pred_fallthru
      _
    // Predicated region
    $region10: #{tpu_custom_call.1} parent=1 // pred_check
      _
    $region11: #{tpu_custom_call.1} parent=1 // pred_check_branch
      %38 = sbr.rel (0) target = $region13
    $region12: #{tpu_custom_call.1} parent=1 // pred_region
      _
    $region13: #{tpu_custom_call.1} parent=1 // pred_fallthru
      _
    // Predicated region
    $region14: #{tpu_custom_call.1} parent=1 // pred_check
      _
    $region15: #{tpu_custom_call.1} parent=1 // pred_check_branch
      %40 = sbr.rel (0) target = $region17
    $region16: #{tpu_custom_call.1} parent=1 // pred_region
      _
    $region17: #{tpu_custom_call.1} parent=1 // pred_fallthru
      _
    // Predicated region
    $region18: #{tpu_custom_call.1} parent=1 // pred_check
      _
    $region19: #{tpu_custom_call.1} parent=1 // pred_check_branch
      %42 = sbr.rel (0) target = $region21
    $region20: #{tpu_custom_call.1} parent=1 // pred_region
      _
    $region21: #{tpu_custom_call.1} parent=1 // pred_fallthru
      _
    // Predicated region
    $region22: #{tpu_custom_call.1} parent=1 // pred_check
      _
    $region23: #{tpu_custom_call.1} parent=1 // pred_check_branch
      %44 = sbr.rel (0) target = $region25
    $region24: #{tpu_custom_call.1} parent=1 // pred_region
      %45 = dma.done [#allocation3], 256
    $region25: #{tpu_custom_call.1} parent=1 // pred_fallthru
      _
    // Predicated region
    $region26: #{tpu_custom_call.1} parent=1 // pred_check
      _
    $region27: #{tpu_custom_call.1} parent=1 // pred_check_branch
      %47 = sbr.rel (0) target = $region29
    $region28: #{tpu_custom_call.1} parent=1 // pred_region
      %48 = dma.done [#allocation6], 512
    $region29: #{tpu_custom_call.1} parent=1 // pred_fallthru
      _
    %v50 = vld [vmem:[#allocation2] sm:$0xff]
    %v51 = vld [vmem:[#allocation2 + $0x8] sm:$0xff]
    %v52 = vld [vmem:[%s3] sm:$0x1]
    %v53 = vld [vmem:[%s4] sm:$0x1]
    %vm54 = vcmask 261120
    %v55 = vsel %vm54, %v50, 0.0
    %56 = vadd.xlane.f32.xlu0 %v55
    %v57 = vpop.xlane.xlu0 %56
    %v58 = vsel %vm54, %v51, 0.0
    %59 = vadd.xlane.f32.xlu0 %v58
    %v60 = vpop.xlane.xlu0 %59
    %v61 = vrcp.pop 32.0
    %v62 = vmul.f32 %v57, %v61
    %v63 = vmul.f32 %v60, %v61
    %v64 = vsub.f32 %v50, %v62
    %v65 = vsub.f32 %v51, %v63
    %v66 = vmul.f32 %v64, %v64
    %v67 = vmul.f32 %v65, %v65
    %v68 = vsel %vm54, %v66, 0.0
    %69 = vadd.xlane.f32.xlu0 %v68
    %v70 = vpop.xlane.xlu0 %69
    %v71 = vsel %vm54, %v67, 0.0
    %72 = vadd.xlane.f32.xlu0 %v71
    %v73 = vpop.xlane.xlu0 %72
    %v74 = vrcp.pop 31.0
    %v75 = vmul.f32 %v70, %v74
    %v76 = vmul.f32 %v73, %v74
    %v77 = vrsqrt.pop %v75
    %v78 = vmul.f32 %v75, %v77
    %vm79 = vcmp.eq.f32.partialorder %v75, inf
    %v80 = vsel %vm79, %v75, %v78
    %vm81 = vcmp.eq.f32.partialorder %v75, 0.0
    %v82 = vand.u32 %v75, 2147483648
    %v83 = vsel %vm81, %v82, %v80
    %v84 = vrsqrt.pop %v76
    %v85 = vmul.f32 %v76, %v84
    %vm86 = vcmp.eq.f32.partialorder %v76, inf
    %v87 = vsel %vm86, %v76, %v85
    %vm88 = vcmp.eq.f32.partialorder %v76, 0.0
    %v89 = vand.u32 %v76, 2147483648
    %v90 = vsel %vm88, %v89, %v87
    %v91 = vadd.f32 %v83, 1e-06
    %v92 = vadd.f32 %v90, 1e-06
    %v93 = vrcp.pop %v91
    %v94 = vrcp.pop %v92
    %v96 = vlaneseq
    %v97 = vshrl.u32 %v96, 7
    %v98 = vsub.s32 0, %v97
    %v99 = vrot.slane %v52, %v98
    %v101 = vmul.f32 %v99, %v64
    %v102 = vmul.f32 %v99, %v65
    %v103 = vmul.f32 %v101, %v93
    %v104 = vmul.f32 %v102, %v94
    %v106 = vlaneseq
    %v107 = vshrl.u32 %v106, 7
    %v108 = vsub.s32 0, %v107
    %v109 = vrot.slane %v53, %v108
    %v111 = vadd.f32 %v103, %v109
    %v112 = vadd.f32 %v104, %v109
    %v113 = vpack.c.bf16 %v112, %v111
    %v114 = vld [vmem:[#allocation5] sm:$0xff]
    %v115 = vld [vmem:[#allocation5 + $0x8] sm:$0xff]
    %v116 = vld [vmem:[#allocation5 + $0x10] sm:$0xff]
    %v117 = vld [vmem:[#allocation5 + $0x18] sm:$0xff]
    %v118 = vld [vmem:[%s2] sm:$0x3]
    %v120 = vlaneseq
    %v121 = vshrl.u32 %v120, 7
    %v122 = vsub.s32 0, %v121
    %v123 = vrot.slane %v118, %v122
    %v124 = vlaneseq
    %v125 = vshrl.u32 %v124, 7
    %v126 = vsub.s32 1, %v125
    %v127 = vrot.slane %v118, %v126
    %v134 = vunpack.c.l.b16 %v114
    %v135 = vunpack.c.h.b16 %v114
    %v136 = vunpack.c.l.b16 %v115
    %v137 = vunpack.c.h.b16 %v115
    %v138 = vunpack.c.l.b16 %v116
    %v139 = vunpack.c.h.b16 %v116
    %v140 = vunpack.c.l.b16 %v117
    %v141 = vunpack.c.h.b16 %v117
    %v142 = vpack.c.b16 %v136, %v134
    %v143 = vpack.c.b16 %v137, %v135
    %v144 = vpack.c.b16 %v140, %v138
    %v145 = vpack.c.b16 %v141, %v139
    %v151 = vsel %vm54, %v113, 0
    %153 = vmatprep.subr.bf16.mxu0 %v143
    %154 = vmatpush1.bf16.msra.mxu0 %v142
    %155 = vmatprep.subr.bf16.mxu0 %v145
    %156 = vmatpush1.bf16.msra.mxu0 %v144
    %157 = vmatprep.subr.bf16.mxu0 0
    %158 = vmatpush1.bf16.msra.mxu0 0
    %159 = vmatprep.subr.bf16.mxu0 0
    %160 = vmatpush1.bf16.msra.mxu0 0
    %161 = vmatprep.subr.bf16.mxu0 0
    %162 = vmatpush1.bf16.msra.mxu0 0
    %163 = vmatprep.subr.bf16.mxu0 0
    %164 = vmatpush1.bf16.msra.mxu0 0
    %165 = vmatprep.subr.bf16.mxu0 0
    %166 = vmatpush1.bf16.msra.mxu0 0
    %167 = vmatprep.subr.bf16.mxu0 0
    %168 = vmatpush1.bf16.msra.mxu0 0
    %169 = vmatprep.subr.bf16.mxu0 0
    %170 = vmatpush1.bf16.msra.mxu0 0
    %171 = vmatprep.subr.bf16.mxu0 0
    %172 = vmatpush1.bf16.msra.mxu0 0
    %173 = vmatprep.subr.bf16.mxu0 0
    %174 = vmatpush1.bf16.msra.mxu0 0
    %175 = vmatprep.subr.bf16.mxu0 0
    %176 = vmatpush1.bf16.msra.mxu0 0
    %177 = vmatprep.subr.bf16.mxu0 0
    %178 = vmatpush1.bf16.msra.mxu0 0
    %179 = vmatprep.subr.bf16.mxu0 0
    %180 = vmatpush1.bf16.msra.mxu0 0
    %181 = vmatprep.subr.bf16.mxu0 0
    %182 = vmatpush1.bf16.msra.mxu0 0
    %183 = vmatprep.subr.bf16.mxu0 0
    %184 = vmatpush1.bf16.msra.mxu0 0
    %185 = vmatprep.mubr.bf16.mxu0 0
    %186 = vmatmul.mubr.bf16.gmra.mrb[0].mxu0 %v151
    %v187 = vpop.f32.mrb[0].mxu0
    %v188 = vadd.f32 %v123, %v187
    %v189 = vpop.f32.mrb[0].mxu0
    %v190 = vadd.f32 %v127, %v189
    %v191 = vpop.f32.mrb[0].mxu0
    %v192 = vadd.f32 %v123, %v191
    %v193 = vpop.f32.mrb[0].mxu0
    %v194 = vadd.f32 %v127, %v193
    %195 = vdwg.mxu0
    %v196 = vmax.f32 %v188, %v190
    %197 = vmax.xlane.f32.xlu0 %v196
    %v198 = vpop.xlane.xlu0 %197
    %v199 = vmax.f32 %v192, %v194
    %200 = vmax.xlane.f32.xlu0 %v199
    %v201 = vpop.xlane.xlu0 %200
    %v202 = vsub.f32 %v188, %v198
    %v203 = vsub.f32 %v190, %v198
    %v204 = vsub.f32 %v192, %v201
    %v205 = vsub.f32 %v194, %v201
    %v206 = vmul.f32 %v202, 1.442695
    %v207 = vpow.pop %v206
    %v208 = vmul.f32 %v203, 1.442695
    %v209 = vpow.pop %v208
    %v210 = vmul.f32 %v204, 1.442695
    %v211 = vpow.pop %v210
    %v212 = vmul.f32 %v205, 1.442695
    %v213 = vpow.pop %v212
    %v214 = vadd.f32 %v207, %v209
    %215 = vadd.xlane.f32.xlu0 %v214
    %v216 = vpop.xlane.xlu0 %215
    %v217 = vadd.f32 %v211, %v213
    %218 = vadd.xlane.f32.xlu0 %v217
    %v219 = vpop.xlane.xlu0 %218
    %v220 = vlog2.pop %v216
    %v221 = vmul.f32 %v220, 0.6931472
    %v222 = vlog2.pop %v219
    %v223 = vmul.f32 %v222, 0.6931472
    %v224 = vsub.f32 %v202, %v221
    %v225 = vsub.f32 %v203, %v221
    %v226 = vsub.f32 %v204, %v223
    %v227 = vsub.f32 %v205, %v223
    %228 = vst [vmem:[#allocation7] sm:$0xff] %v224
    %229 = vst [vmem:[#allocation7 + $0x8] sm:$0xff] %v225
    %230 = vst [vmem:[#allocation7 + $0x10] sm:$0xff] %v226
    %231 = vst [vmem:[#allocation7 + $0x18] sm:$0xff] %v227
    // Predicated region
    $region30: #{tpu_custom_call.1} parent=1 // pred_check
      _
    $region31: #{tpu_custom_call.1} parent=1 // pred_check_branch
      %233 = sbr.rel (0) target = $region33
    $region32: #{tpu_custom_call.1} parent=1 // pred_region
      %s235 = ssub.s32 512, 512
      %236 = vsyncadd [#allocation4], %s235
      %s237 = sshll.u32 [#allocation7], 4
      %s238 = int_to_ptr.vmem [resolvable:$true] %s237
      %243 = dma.vmem_to_hbm [thread:$0]  %s238, 512, %s5, [#allocation4], 256, 256, 16
    $region33: #{tpu_custom_call.1} parent=1 // pred_fallthru
      _
    // Predicated region
    $region34: #{tpu_custom_call.1} parent=1 // pred_check
      _
    $region35: #{tpu_custom_call.1} parent=1 // pred_check_branch
      %245 = sbr.rel (0) target = $region37
    $region36: #{tpu_custom_call.1} parent=1 // pred_region
      %246 = dma.done [#allocation4], 512
    $region37: #{tpu_custom_call.1} parent=1 // pred_fallthru
      _
    %247 = vsyncpa [#allocation3], 1
    %248 = vsyncpa [#allocation6], 1
    %249 = vsyncpa [#allocation4], 1

</llo_original>
